<compile_context>
chip_gen: v7x
topology: tpu7x:2x2x1
jax: 0.10.0
libtpu: 0.0.40
codegen_flags: <defaults>
</compile_context>

<pallas_src>
import functools

import jax
import jax.numpy as jnp
from jax.experimental import pallas as pl
from jax.experimental.pallas import tpu as pltpu

_LANES = 128


def _channelnorm_kernel(x_ref, o_ref):
    # x_ref: (1, C, S, 128) block; o_ref: (1, 1, S, 128) block.
    C = x_ref.shape[1]
    x0 = x_ref[0, 0].astype(jnp.float32)
    acc = x0 * x0
    # ChannelNorm is used with small C (e.g. flow fields); static unroll keeps
    # everything on the VPU with a single (S, 128) f32 accumulator.
    for c in range(1, C):
        xc = x_ref[0, c].astype(jnp.float32)
        acc = acc + xc * xc
    o_ref[0, 0] = jnp.sqrt(acc).astype(o_ref.dtype)


@functools.partial(jax.jit, static_argnames=("tile_rows",))
def channel_norm(x, *, tile_rows=None):
    """x: (B, C, H, W) -> (B, 1, H, W), L2 norm over the channel axis."""
    B, C, H, W = x.shape
    HW = H * W
    itemsize = jnp.dtype(x.dtype).itemsize

    rows = pl.cdiv(HW, _LANES)  # spatial rows of 128 lanes

    # Pick the spatial tile (in rows of 128 lanes).
    if tile_rows is None:
        # ~2 MiB per input block -> ~4 MiB double-buffered; leaves generous
        # headroom under the 16/32 MiB scoped-VMEM defaults (v5e / v6e,v7x)
        # even with the f32 accumulator and output buffers.
        target_bytes = 2 * 1024 * 1024
        max_rows = max(8, target_bytes // (C * _LANES * itemsize))
        max_rows = min(max_rows, 1024)
        if rows <= max_rows:
            S = rows  # whole (padded) spatial extent -> full-dim block is legal
        else:
            S = max(8, (max_rows // 8) * 8)  # honor the (8, 128) tiling rule
    else:
        S = int(tile_rows)

    rows_p = pl.cdiv(rows, S) * S
    HW_p = rows_p * _LANES

    x_flat = x.reshape(B, C, HW)
    if HW_p != HW:
        # Zero padding is harmless: padded lanes produce sqrt(0)=0, sliced off.
        x_flat = jnp.pad(x_flat, ((0, 0), (0, 0), (0, HW_p - HW)))
    x4 = x_flat.reshape(B, C, rows_p, _LANES)

    grid = (B, rows_p // S)

    out = pl.pallas_call(
        _channelnorm_kernel,
        out_shape=jax.ShapeDtypeStruct((B, 1, rows_p, _LANES), x.dtype),
        grid_spec=pltpu.PrefetchScalarGridSpec(
            num_scalar_prefetch=0,
            grid=grid,
            in_specs=[pl.BlockSpec((1, C, S, _LANES), lambda b, s: (b, 0, s, 0))],
            out_specs=pl.BlockSpec((1, 1, S, _LANES), lambda b, s: (b, 0, s, 0)),
        ),
        compiler_params=pltpu.CompilerParams(
            dimension_semantics=("parallel", "parallel"),
        ),
        cost_estimate=pl.CostEstimate(
            flops=2 * B * C * HW_p,
            transcendentals=B * HW_p,
            bytes_accessed=(B * C * HW_p + B * HW_p) * itemsize,
        ),
    )(x4)

    out = out.reshape(B, 1, HW_p)
    if HW_p != HW:
        out = out[:, :, :HW]
    return out.reshape(B, 1, H, W)


# TODO(synk): backward pass (kernel_ChannelNorm_backward_input1) not implemented;
# only the forward of ModuleChannelNorm is translated here.


if __name__ == "__main__":
    key = jax.random.PRNGKey(0)
    B, C, H, W = 2, 4, 16, 16
    x = jax.random.normal(key, (B, C, H, W), dtype=jnp.float32)

    y = channel_norm(x)
    jax.block_until_ready(y)

    # reference check (plain JAX)
    y_ref = jnp.sqrt(jnp.sum(x.astype(jnp.float32) ** 2, axis=1, keepdims=True))
    assert y.shape == (B, 1, H, W)
    assert jnp.allclose(y, y_ref, atol=1e-5, rtol=1e-5)

    # also exercise a non-128-aligned spatial size + bf16 path once
    x2 = jax.random.normal(key, (2, 6, 17, 19), dtype=jnp.bfloat16)
    y2 = channel_norm(x2)
    jax.block_until_ready(y2)
    y2_ref = jnp.sqrt(jnp.sum(x2.astype(jnp.float32) ** 2, axis=1, keepdims=True))
    assert y2.shape == (2, 1, 17, 19)
    assert jnp.allclose(y2.astype(jnp.float32), y2_ref, atol=2e-2, rtol=2e-2)

    # larger spatial size to exercise the multi-tile (grid > 1) path
    x3 = jax.random.normal(key, (1, 2, 192, 256), dtype=jnp.float32)
    y3 = channel_norm(x3, tile_rows=128)
    jax.block_until_ready(y3)
    y3_ref = jnp.sqrt(jnp.sum(x3 ** 2, axis=1, keepdims=True))
    assert jnp.allclose(y3, y3_ref, atol=1e-5, rtol=1e-5)

    print("KERNEL_OK")
</pallas_src>

<mosaic_0001>
module attributes {stable_mosaic.version = 11 : i64} {
  func.func @_channelnorm_kernel(%arg0: i32, %arg1: i32, %arg2: memref<1x4x2x128xf32, #tpu.memory_space<vmem>>, %arg3: memref<1x1x2x128xf32, #tpu.memory_space<vmem>>) attributes {dimension_semantics = [#tpu.dimension_semantics<parallel>, #tpu.dimension_semantics<parallel>], iteration_bounds = array<i64: 2, 1>, scalar_prefetch = 0 : i64, scratch_operands = 0 : i64, tpu.core_type = #tpu.core_type<tc>, window_params = [{transform_indices = @transform_0, window_bounds = array<i64: 1, 4, 2, 128>}, {transform_indices = @transform_1, window_bounds = array<i64: 1, 1, 2, 128>}]} {
    %c0 = arith.constant 0 : index
    %c0_0 = arith.constant 0 : index
    %c0_1 = arith.constant 0 : index
    %c0_2 = arith.constant 0 : index
    %0 = vector.load %arg2[%c0, %c0_0, %c0_1, %c0_2] : memref<1x4x2x128xf32, #tpu.memory_space<vmem>>, vector<1x1x2x128xf32>
    %1 = vector.shape_cast %0 : vector<1x1x2x128xf32> to vector<2x128xf32>
    %2 = arith.mulf %1, %1 : vector<2x128xf32>
    %c0_3 = arith.constant 0 : index
    %c1 = arith.constant 1 : index
    %c0_4 = arith.constant 0 : index
    %c0_5 = arith.constant 0 : index
    %3 = vector.load %arg2[%c0_3, %c1, %c0_4, %c0_5] : memref<1x4x2x128xf32, #tpu.memory_space<vmem>>, vector<1x1x2x128xf32>
    %4 = vector.shape_cast %3 : vector<1x1x2x128xf32> to vector<2x128xf32>
    %5 = arith.mulf %4, %4 : vector<2x128xf32>
    %6 = arith.addf %2, %5 : vector<2x128xf32>
    %c0_6 = arith.constant 0 : index
    %c2 = arith.constant 2 : index
    %c0_7 = arith.constant 0 : index
    %c0_8 = arith.constant 0 : index
    %7 = vector.load %arg2[%c0_6, %c2, %c0_7, %c0_8] : memref<1x4x2x128xf32, #tpu.memory_space<vmem>>, vector<1x1x2x128xf32>
    %8 = vector.shape_cast %7 : vector<1x1x2x128xf32> to vector<2x128xf32>
    %9 = arith.mulf %8, %8 : vector<2x128xf32>
    %10 = arith.addf %6, %9 : vector<2x128xf32>
    %c0_9 = arith.constant 0 : index
    %c3 = arith.constant 3 : index
    %c0_10 = arith.constant 0 : index
    %c0_11 = arith.constant 0 : index
    %11 = vector.load %arg2[%c0_9, %c3, %c0_10, %c0_11] : memref<1x4x2x128xf32, #tpu.memory_space<vmem>>, vector<1x1x2x128xf32>
    %12 = vector.shape_cast %11 : vector<1x1x2x128xf32> to vector<2x128xf32>
    %13 = arith.mulf %12, %12 : vector<2x128xf32>
    %14 = arith.addf %10, %13 : vector<2x128xf32>
    %15 = math.sqrt %14 : vector<2x128xf32>
    %c0_12 = arith.constant 0 : index
    %c0_13 = arith.constant 0 : index
    %c0_14 = arith.constant 0 : index
    %c0_15 = arith.constant 0 : index
    %16 = vector.load %arg3[%c0_12, %c0_13, %c0_14, %c0_15] : memref<1x1x2x128xf32, #tpu.memory_space<vmem>>, vector<1x1x2x128xf32>
    %17 = vector.shape_cast %16 : vector<1x1x2x128xf32> to vector<2x128xf32>
    %18 = vector.shape_cast %15 : vector<2x128xf32> to vector<1x1x2x128xf32>
    tpu.vector_store %arg3[%c0_12, %c0_13, %c0_14, %c0_15], %18 {strides = array<i32>} : memref<1x1x2x128xf32, #tpu.memory_space<vmem>>, vector<1x1x2x128xf32>,
    return
  }
  func.func @transform_0(%arg0: i32, %arg1: i32) -> (i32, i32, i32, i32) {
    %c0_i32 = arith.constant 0 : i32
    %c0_i32_0 = arith.constant 0 : i32
    %c0_i32_1 = arith.constant 0 : i32
    return %arg0, %c0_i32, %arg1, %c0_i32_0 : i32, i32, i32, i32
  }
  func.func @transform_1(%arg0: i32, %arg1: i32) -> (i32, i32, i32, i32) {
    %c0_i32 = arith.constant 0 : i32
    %c0_i32_0 = arith.constant 0 : i32
    %c0_i32_1 = arith.constant 0 : i32
    return %arg0, %c0_i32, %arg1, %c0_i32_0 : i32, i32, i32, i32
  }
}

</mosaic_0001>

<llo_original>
// kernel: channel_norm.1
$region0: #{channel_norm.1}
  #allocation0 [shape = 'u32[]', space=smem, size = 0x4, offset = 0x4, fixed_abs, tag = 'smem constant byte address 0x4 - core index']
  #allocation1 [shape = 'u32[144,128]{1,0:T(1,128)}', space=vmem, size = 0x12000, scoped, tag = 'internal scratch']
  %s0 = inlined_call_operand.vmem [shape: f32[2,4,2,128], index: 0, kind: input, shape index: {}]
  %s1 = inlined_call_operand.vmem [shape: f32[2,1,2,128], index: 1, kind: output, shape index: {}]
  %s2 = sld [smem:[#allocation0]]
  $region37: #{channel_norm.1} parent=0
    _
  %s4 = ssub.s32 1, %s2
  %s5 = scalar_select 0, %s4, %s2
  loop: start=0, step=1, limit=4
  $region2: #{channel_norm.1} parent=0 // loop_pre_header
    _
  $region3: #{channel_norm.1} parent=0 // loop_header
    %s7 = sphi 0, %s11
    %p8 = scmp.ge.s32.totalorder %s7, 4
    %s14 = sphi 0, %s26
    %s15 = sphi 0, %s22
    %s16 = sphi 0, %s14
    %s17 = sphi 0, %s15
    %s18 = sphi 0, %s16
    %s19 = sphi 0, %s17
    %s31 = sphi 0, %s33
    %s34 = sphi 0, %s31
    %s35 = sphi 0, %s34
    %s51 = sphi 0, %s35
    %s59 = sphi 0, %s61
    %s62 = sphi 0, %s59
    %s63 = sphi 0, %s62
    %s79 = sphi 0, %s63
  $region4: #{channel_norm.1} parent=0 // loop_header_branch
    %10 = sbr.rel (%p8) target = $region8
  $region5: #{channel_norm.1} parent=0 // loop_body
    %s12 = ssub.s32 %s7, 1
    %s13 = ssub.s32 %s7, 2
    %s20 = sadd.s32 1, %s15
    %p21 = scmp.ge.s32.totalorder %s20, 1
    %s22 = scalar_select %p21, 0, %s20
    %s23 = sadd.s32 1, %s14
    %s24 = scalar_select %p21, %s23, %s14
    %p25 = scmp.ge.s32.totalorder %s24, 2
    %s26 = scalar_select %p25, 0, %s24
    %s27 = ssub.s32 %s14, %s26
    %s28 = ssub.s32 %s15, %s22
    %s29 = sor.u32 %s27, %s28
    %p30 = scmp.eq.s32.totalorder %s29, 0
    %s32 = sadd.s32 %s31, 1
    %s33 = scalar_select %p30, %s31, %s32
    %p36 = pneg %p30
    %p37 = scmp.eq.s32.totalorder %s7, 1
    %p38 = por %p36, %p37
    %p39 = scmp.ne.s32.totalorder %s31, %s34
    %p40 = scmp.eq.s32.totalorder %s7, 0
    %p41 = por %p39, %p40
    %p42 = scmp.ne.s32.totalorder %s31, %s34
    %p43 = scmp.eq.s32.totalorder %s12, 1
    %p44 = por %p42, %p43
    %p45 = scmp.ne.s32.totalorder %s34, %s35
    %p46 = scmp.eq.s32.totalorder %s12, 0
    %p47 = por %p45, %p46
    %p48 = scmp.ne.s32.totalorder %s34, %s35
    %p49 = scmp.eq.s32.totalorder %s13, 1
    %p50 = por %p48, %p49
    %p52 = scmp.ne.s32.totalorder %s35, %s51
    %p53 = scmp.eq.s32.totalorder %s13, 0
    %p54 = por %p52, %p53
    %s55 = ssub.s32 %s14, %s26
    %s56 = ssub.s32 %s15, %s22
    %s57 = sor.u32 %s55, %s56
    %p58 = scmp.eq.s32.totalorder %s57, 0
    %s60 = sadd.s32 %s59, 1
    %s61 = scalar_select %p58, %s59, %s60
    %p64 = pneg %p58
    %p65 = scmp.eq.s32.totalorder %s7, 1
    %p66 = por %p64, %p65
    %p67 = scmp.ne.s32.totalorder %s59, %s62
    %p68 = scmp.eq.s32.totalorder %s7, 0
    %p69 = por %p67, %p68
    %p70 = scmp.ne.s32.totalorder %s59, %s62
    %p71 = scmp.eq.s32.totalorder %s12, 1
    %p72 = por %p70, %p71
    %p73 = scmp.ne.s32.totalorder %s62, %s63
    %p74 = scmp.eq.s32.totalorder %s12, 0
    %p75 = por %p73, %p74
    %p76 = scmp.ne.s32.totalorder %s62, %s63
    %p77 = scmp.eq.s32.totalorder %s13, 1
    %p78 = por %p76, %p77
    %p80 = scmp.ne.s32.totalorder %s63, %s79
    %p81 = scmp.eq.s32.totalorder %s13, 0
    %p82 = por %p80, %p81
    %p83 = scmp.le.s32.totalorder 1, %s7
    %p84 = scmp.lt.s32.totalorder %s7, 3
    %p85 = pnand %p83, %p84
    %p86 = pneg %p85
    // Predicated region
    $region9: #{channel_norm.1} parent=5 // pred_check
      _
    $region10: #{channel_norm.1} parent=5 // pred_check_branch
      %88 = sbr.rel (%p85) target = $region12
    $region11: #{channel_norm.1} parent=5 // pred_region
      %s89 = ssub.s32 %s7, 1
    $region12: #{channel_norm.1} parent=5 // pred_fallthru
      _
    %p90 = scmp.lt.s32.totalorder %s7, 2
    // Predicated region
    $region13: #{channel_norm.1} parent=5 // pred_check
      %p91 = pneg %p90
    $region14: #{channel_norm.1} parent=5 // pred_check_branch
      %93 = sbr.rel (%p91) target = $region16
    $region15: #{channel_norm.1} parent=5 // pred_region
      // Predicated region
      $region17: #{channel_norm.1} parent=15 // pred_check
        %p94 = pneg %p41
      $region18: #{channel_norm.1} parent=15 // pred_check_branch
        %96 = sbr.rel (%p94) target = $region20
      $region19: #{channel_norm.1} parent=15 // pred_region
        %p97 = scmp.lt.s32.totalorder %s14, 1
        %s98 = scalar_select %p97, %s14, 1
        %p99 = scmp.lt.s32.totalorder %s15, 0
        %s100 = scalar_select %p99, %s15, 0
        %s101 = smul.addr %s98, 4
        %s102 = sadd.s32 %s100, %s101
        %s103 = smul.addr %s102, 2
        %s104 = scalar_lea.vmem %s0, %s103
      $region20: #{channel_norm.1} parent=15 // pred_fallthru
        _
    $region16: #{channel_norm.1} parent=5 // pred_fallthru
      _
    %p105 = scmp.le.s32.totalorder 1, %s7
    %p106 = scmp.lt.s32.totalorder %s7, 3
    %p107 = pnand %p105, %p106
    %p108 = pneg %p107
    // Predicated region
    $region21: #{channel_norm.1} parent=5 // pred_check
      _
    $region22: #{channel_norm.1} parent=5 // pred_check_branch
      %110 = sbr.rel (%p107) target = $region24
    $region23: #{channel_norm.1} parent=5 // pred_region
      %s111 = ssub.s32 %s7, 1
      %p112 = scmp.lt.s32.totalorder %s16, 1
      %s113 = scalar_select %p112, %s16, 1
      %p114 = scmp.lt.s32.totalorder %s17, 0
      %s115 = scalar_select %p114, %s17, 0
      %s116 = smul.addr %s113, 4
      %s117 = sadd.s32 %s115, %s116
      %s118 = smul.addr %s117, 2
      %s119 = scalar_lea.vmem %s0, %s118
      %p120 = pneg %p47
      %p121 = pneg %p44
      %p122 = pneg %p75
      %p123 = pneg %p72
      %p124 = scmp.lt.s32.totalorder %s16, 1
      %s125 = scalar_select %p124, %s16, 1
      %p126 = scmp.lt.s32.totalorder %s17, 0
      %s127 = scalar_select %p126, %s17, 0
      %s128 = sadd.s32 %s127, %s125
      %s129 = smul.addr %s128, 2
      %s130 = scalar_lea.vmem %s1, %s129
      %p131 = scmp.lt.s32.totalorder %s16, 1
      %s132 = scalar_select %p131, %s16, 1
      %p133 = scmp.lt.s32.totalorder %s17, 0
      %s134 = scalar_select %p133, %s17, 0
      %s135 = smul.addr %s132, 4
      %s136 = sadd.s32 %s134, %s135
      %s137 = smul.addr %s136, 2
      %s138 = scalar_lea.vmem %s0, %s137
      %p139 = scmp.lt.s32.totalorder %s16, 1
      %s140 = scalar_select %p139, %s16, 1
      %p141 = scmp.lt.s32.totalorder %s17, 0
      %s142 = scalar_select %p141, %s17, 0
      %s143 = sadd.s32 %s142, %s140
      %s144 = smul.addr %s143, 2
      %s145 = scalar_lea.vmem %s1, %s144
      %v146 = vld [vmem:[%s138] sm:$0x3]
      %v147 = vmul.f32 %v146, %v146
      %s148 = scalar_lea.vmem %s138, 2
      %v149 = vld [vmem:[%s148] sm:$0x3]
      %v150 = vmul.f32 %v149, %v149
      %v151 = vadd.f32 %v147, %v150
      %s152 = scalar_lea.vmem %s138, 4
      %v153 = vld [vmem:[%s152] sm:$0x3]
      %v154 = vmul.f32 %v153, %v153
      %v155 = vadd.f32 %v151, %v154
      %s156 = scalar_lea.vmem %s138, 6
      %v157 = vld [vmem:[%s156] sm:$0x3]
      %v158 = vmul.f32 %v157, %v157
      %v159 = vadd.f32 %v155, %v158
      %v160 = vrsqrt.pop %v159
      %v161 = vmul.f32 %v159, %v160
      %vm162 = vcmp.eq.f32.partialorder %v159, inf
      %v163 = vsel %vm162, %v159, %v161
      %vm164 = vcmp.eq.f32.partialorder %v159, 0.0
      %v165 = vand.u32 %v159, 2147483648
      %v166 = vsel %vm164, %v165, %v163
      %167 = vst [vmem:[%s145] sm:$0x3] %v166
      %p168 = scmp.lt.s32.totalorder %s16, 1
      %s169 = scalar_select %p168, %s16, 1
      %p170 = scmp.lt.s32.totalorder %s17, 0
      %s171 = scalar_select %p170, %s17, 0
      %s172 = sadd.s32 %s171, %s169
      %s173 = smul.addr %s172, 2
      %s174 = scalar_lea.vmem %s1, %s173
      // Predicated region
      $region25: #{channel_norm.1} parent=23 // pred_check
        %p175 = pneg %p72
      $region26: #{channel_norm.1} parent=23 // pred_check_branch
        %177 = sbr.rel (%p175) target = $region28
      $region27: #{channel_norm.1} parent=23 // pred_region
        _
      $region28: #{channel_norm.1} parent=23 // pred_fallthru
        _
    $region24: #{channel_norm.1} parent=5 // pred_fallthru
      _
    %p178 = scmp.le.s32.totalorder 2, %s7
    // Predicated region
    $region29: #{channel_norm.1} parent=5 // pred_check
      %p179 = pneg %p178
    $region30: #{channel_norm.1} parent=5 // pred_check_branch
      %181 = sbr.rel (%p179) target = $region32
    $region31: #{channel_norm.1} parent=5 // pred_region
      %s182 = ssub.s32 %s7, 2
      // Predicated region
      $region33: #{channel_norm.1} parent=31 // pred_check
        %p183 = pneg %p78
      $region34: #{channel_norm.1} parent=31 // pred_check_branch
        %185 = sbr.rel (%p183) target = $region36
      $region35: #{channel_norm.1} parent=31 // pred_region
        %p186 = scmp.lt.s32.totalorder %s18, 1
        %s187 = scalar_select %p186, %s18, 1
        %p188 = scmp.lt.s32.totalorder %s19, 0
        %s189 = scalar_select %p188, %s19, 0
        %s190 = sadd.s32 %s189, %s187
        %s191 = smul.addr %s190, 2
        %s192 = scalar_lea.vmem %s1, %s191
      $region36: #{channel_norm.1} parent=31 // pred_fallthru
        _
    $region32: #{channel_norm.1} parent=5 // pred_fallthru
      _
  $region6: #{channel_norm.1} parent=0 // loop_footer
    %s11 = sadd.s32 1, %s7
  $region7: #{channel_norm.1} parent=0 // loop_footer_branch
    %6 = sbr.rel target = $region3
  $region8: #{channel_norm.1} parent=0 // loop_exit
    _

</llo_original>
